<compile_context>
chip_gen: v7x
topology: tpu7x:2x2x1
jax: 0.10.0
libtpu: 0.0.40
codegen_flags: <defaults>
</compile_context>

<pallas_src>
import functools

import jax
import jax.numpy as jnp
from jax import lax
from jax.experimental import pallas as pl
from jax.experimental.pallas import tpu as pltpu


# ---------------- kernel A: hoisted atom-side linear terms ----------------
def pre_kernel(atom_ref, wslab_ref, pself_ref, pnbr_ref):
    a_dim = atom_ref.shape[1]
    two_a = pself_ref.shape[1]
    # wslab = [[W_self | W_nbr], [bias | 0]] -> one lane-dense (A, 4A) matmul.
    pre = (jnp.dot(atom_ref[...], wslab_ref[:a_dim, :],
                   preferred_element_type=jnp.float32)
           + wslab_ref[a_dim:, :])
    pself_ref[...] = pre[:, :two_a]     # self term (fc bias folded in)
    pnbr_ref[...] = pre[:, two_a:]      # neighbor term (gathered by index in B)


# -------- kernel B: per-edge-tile z + BN1 partial statistics --------------
def edge_kernel(idx_ref, pself_ref, pnbr_ref, bond_ref, wbond_ref,
                z_ref, stats_ref, *, M):
    te = z_ref.shape[0]                       # edges in this tile (= TA * M)
    base = pl.program_id(0) * te              # first flat edge of this tile

    # Index gather of the hoisted neighbor term + broadcast of the self term.
    # Replaces the old O(N * N * M) one-hot matmuls with O(N * M) row copies.
    def gather_body(e, carry):
        j = idx_ref[base + e]                 # SMEM scalar read (prefetched idx)
        z_ref[e, :] = pnbr_ref[j, :] + pself_ref[e // M, :]
        return carry
    lax.fori_loop(0, te, gather_body, 0)

    # Fused bond matmul: filter and core halves come out of one MXU op (2A lanes).
    # TODO(synk): optional bf16 cast of bond/wbond for v6e/v7x MXU throughput
    # (kept f32 here to stay well inside the f32 reference tolerance).
    z = z_ref[...] + jnp.dot(bond_ref[...], wbond_ref[...],
                             preferred_element_type=jnp.float32)
    z_ref[...] = z
    stats_ref[0, 0, :] = jnp.sum(z, axis=0)       # per-channel sum
    stats_ref[0, 1, :] = jnp.sum(z * z, axis=0)   # per-channel sum of squares


# -------- kernel C: BN1 + gate + per-atom neighbor sum + BN2 stats --------
def gate_sum_kernel(z_ref, stats1_ref, bn1_ref, nbr_ref, stats2_ref, gated_ref,
                    *, M, nm_total, eps):
    te, two_a = z_ref.shape
    a_dim = two_a // 2
    ta = te // M

    # Finalize global BN1 statistics from the per-tile partials (tiny).
    mean = jnp.sum(stats1_ref[:, 0, :], axis=0) / nm_total
    ex2 = jnp.sum(stats1_ref[:, 1, :], axis=0) / nm_total
    rstd = lax.rsqrt(ex2 - mean * mean + eps)
    zn = (z_ref[...] - mean) * (rstd * bn1_ref[0, :]) + bn1_ref[1, :]

    gated_ref[...] = (jax.nn.sigmoid(zn[:, :a_dim])
                      * jax.nn.softplus(zn[:, a_dim:]))

    # Neighbors of local atom i occupy contiguous rows [i*M, (i+1)*M):
    # sum each M-row block (VPU/XLU work, no one-hot segment matmul).
    def sum_body(i, carry):
        start = pl.multiple_of(i * M, M)
        nbr_ref[i, :] = jnp.sum(gated_ref[pl.ds(start, M), :], axis=0)
        return carry
    lax.fori_loop(0, ta, sum_body, 0)

    summed = nbr_ref[...]
    stats2_ref[0, 0, :] = jnp.sum(summed, axis=0)
    stats2_ref[0, 1, :] = jnp.sum(summed * summed, axis=0)


# -------- kernel D: BN2 + residual + softplus ------------------------------
def bn2_out_kernel(nbr_ref, atom_ref, stats2_ref, bn2_ref, out_ref,
                   *, n_total, eps):
    mean = jnp.sum(stats2_ref[:, 0, :], axis=0) / n_total
    ex2 = jnp.sum(stats2_ref[:, 1, :], axis=0) / n_total
    rstd = lax.rsqrt(ex2 - mean * mean + eps)
    ns = (nbr_ref[...] - mean) * (rstd * bn2_ref[0, :]) + bn2_ref[1, :]
    out_ref[...] = jax.nn.softplus(atom_ref[...] + ns)


# ---------------------------- wrapper --------------------------------------
def _pick_tile_atoms(n_atoms, m_nbrs, max_edges_per_tile=2048):
    cap = max(1, min(n_atoms, max_edges_per_tile // max(1, m_nbrs)))
    for ta in range(cap, 0, -1):
        if n_atoms % ta == 0 and (ta % 8 == 0 or ta == n_atoms):
            return ta
    return n_atoms


def conv_layer_forward(atom_fea, nbr_fea, nbr_fea_idx, params, *,
                       tile_atoms=None, eps=1e-5):
    """ConvLayer.forward (training-mode batchnorm) as Pallas TPU kernels."""
    N, A = atom_fea.shape
    _, M, B = nbr_fea.shape
    NM = N * M

    TA = tile_atoms if tile_atoms is not None else _pick_tile_atoms(N, M)
    assert N % TA == 0, "tile_atoms must divide N"
    T = N // TA            # number of atom tiles (grid size)
    TE = TA * M            # edges per tile

    atom = atom_fea.astype(jnp.float32)
    bond = nbr_fea.reshape(NM, B).astype(jnp.float32)
    idx = nbr_fea_idx.reshape(NM).astype(jnp.int32)

    W = params["fc_w"].astype(jnp.float32)      # (2A + B, 2A), applied as x @ W
    b = params["fc_b"].astype(jnp.float32)      # (2A,)
    w_self, w_nbr, w_bond = W[:A], W[A:2 * A], W[2 * A:]

    # Packed parameter slabs (few refs instead of ~15 tiny (1, A) ones).
    w_atom_slab = jnp.concatenate([
        jnp.concatenate([w_self, w_nbr], axis=1),                        # (A, 4A)
        jnp.concatenate([b[None, :], jnp.zeros((1, 2 * A), jnp.float32)], axis=1),
    ], axis=0)                                                           # (A+1, 4A)
    bn1_slab = jnp.stack([params["bn1_g"], params["bn1_b"]]).astype(jnp.float32)  # (2, 2A)
    bn2_slab = jnp.stack([params["bn2_g"], params["bn2_b"]]).astype(jnp.float32)  # (2, A)

    vmem = pl.BlockSpec(memory_space=pltpu.MemorySpace.VMEM)
    cparams = pltpu.CompilerParams(dimension_semantics=("parallel",),
                                   vmem_limit_bytes=32 * 1024 * 1024)

    # --- A: hoisted atom-side matmul (once per atom, not once per neighbor) ---
    pre_self, pre_nbr = pl.pallas_call(
        pre_kernel,
        out_shape=(jax.ShapeDtypeStruct((N, 2 * A), jnp.float32),
                   jax.ShapeDtypeStruct((N, 2 * A), jnp.float32)),
        in_specs=[vmem, vmem],
        out_specs=(vmem, vmem),
    )(atom, w_atom_slab)

    # --- B: edge-tiled z + BN1 partial stats ---
    # TODO(synk): for very large N, pre_nbr should stay in HBM (pl.ANY) with a
    # manual DMA gather instead of a full VMEM-resident copy.
    z, stats1 = pl.pallas_call(
        functools.partial(edge_kernel, M=M),
        out_shape=(jax.ShapeDtypeStruct((NM, 2 * A), jnp.float32),
                   jax.ShapeDtypeStruct((T, 2, 2 * A), jnp.float32)),
        grid_spec=pltpu.PrefetchScalarGridSpec(
            num_scalar_prefetch=1,               # nbr_fea_idx -> SMEM
            grid=(T,),
            in_specs=[pl.BlockSpec((TA, 2 * A), lambda t, idx_r: (t, 0)),
                      pl.BlockSpec((N, 2 * A), lambda t, idx_r: (0, 0)),
                      pl.BlockSpec((TE, B), lambda t, idx_r: (t, 0)),
                      pl.BlockSpec((B, 2 * A), lambda t, idx_r: (0, 0))],
            out_specs=[pl.BlockSpec((TE, 2 * A), lambda t, idx_r: (t, 0)),
                       pl.BlockSpec((1, 2, 2 * A), lambda t, idx_r: (t, 0, 0))]),
        compiler_params=cparams,
    )(idx, pre_self, pre_nbr, bond, w_bond)

    # --- C: BN1 normalize + gate + per-atom neighbor sum + BN2 partial stats ---
    nbr_sumed, stats2 = pl.pallas_call(
        functools.partial(gate_sum_kernel, M=M, nm_total=float(NM), eps=eps),
        out_shape=(jax.ShapeDtypeStruct((N, A), jnp.float32),
                   jax.ShapeDtypeStruct((T, 2, A), jnp.float32)),
        grid_spec=pltpu.PrefetchScalarGridSpec(
            num_scalar_prefetch=0,
            grid=(T,),
            in_specs=[pl.BlockSpec((TE, 2 * A), lambda t: (t, 0)),
                      pl.BlockSpec((T, 2, 2 * A), lambda t: (0, 0, 0)),
                      pl.BlockSpec((2, 2 * A), lambda t: (0, 0))],
            out_specs=[pl.BlockSpec((TA, A), lambda t: (t, 0)),
                       pl.BlockSpec((1, 2, A), lambda t: (t, 0, 0))],
            scratch_shapes=[pltpu.VMEM((TE, A), jnp.float32)]),
        compiler_params=cparams,
    )(z, stats1, bn1_slab)

    # --- D: BN2 normalize + residual + softplus ---
    out = pl.pallas_call(
        functools.partial(bn2_out_kernel, n_total=float(N), eps=eps),
        out_shape=jax.ShapeDtypeStruct((N, A), jnp.float32),
        grid_spec=pltpu.PrefetchScalarGridSpec(
            num_scalar_prefetch=0,
            grid=(T,),
            in_specs=[pl.BlockSpec((TA, A), lambda t: (t, 0)),
                      pl.BlockSpec((TA, A), lambda t: (t, 0)),
                      pl.BlockSpec((T, 2, A), lambda t: (0, 0, 0)),
                      pl.BlockSpec((2, A), lambda t: (0, 0))],
            out_specs=pl.BlockSpec((TA, A), lambda t: (t, 0))),
        compiler_params=cparams,
    )(nbr_sumed, atom, stats2, bn2_slab)

    return out


# ------------------------ pure-JAX reference -------------------------------
def _reference_forward(atom_fea, nbr_fea, nbr_fea_idx, params, eps=1e-5):
    """Replicates the PyTorch forward (training-mode BatchNorm)."""
    N, M = nbr_fea_idx.shape
    A = atom_fea.shape[1]
    atom_nbr = atom_fea[nbr_fea_idx]                                    # (N, M, A)
    total = jnp.concatenate(
        [jnp.broadcast_to(atom_fea[:, None, :], (N, M, A)), atom_nbr, nbr_fea], axis=2)
    z = total @ params["fc_w"] + params["fc_b"]                         # (N, M, 2A)
    zf = z.reshape(N * M, 2 * A)
    mean = zf.mean(0); var = ((zf - mean) ** 2).mean(0)
    zf = (zf - mean) / jnp.sqrt(var + eps) * params["bn1_g"] + params["bn1_b"]
    z = zf.reshape(N, M, 2 * A)
    filt, core = z[..., :A], z[..., A:]
    summed = jnp.sum(jax.nn.sigmoid(filt) * jax.nn.softplus(core), axis=1)
    mean2 = summed.mean(0); var2 = ((summed - mean2) ** 2).mean(0)
    summed = (summed - mean2) / jnp.sqrt(var2 + eps) * params["bn2_g"] + params["bn2_b"]
    return jax.nn.softplus(atom_fea + summed)


def init_params(key, atom_fea_len, nbr_fea_len):
    in_dim = 2 * atom_fea_len + nbr_fea_len
    out_dim = 2 * atom_fea_len
    kw, kb = jax.random.split(key)
    bound = 1.0 / jnp.sqrt(in_dim)
    return {
        # stored as (in, out) so the kernel computes x @ W (equiv. to x @ W_pt.T)
        "fc_w": jax.random.uniform(kw, (in_dim, out_dim), jnp.float32, -bound, bound),
        "fc_b": jax.random.uniform(kb, (out_dim,), jnp.float32, -bound, bound),
        "bn1_g": jnp.ones((out_dim,), jnp.float32),
        "bn1_b": jnp.zeros((out_dim,), jnp.float32),
        "bn2_g": jnp.ones((atom_fea_len,), jnp.float32),
        "bn2_b": jnp.zeros((atom_fea_len,), jnp.float32),
    }


if __name__ == "__main__":
    atom_fea_len, nbr_fea_len = 32, 16
    N, M = 16, 8

    key = jax.random.PRNGKey(0)
    k_p, k_a, k_n, k_i = jax.random.split(key, 4)

    params = init_params(k_p, atom_fea_len, nbr_fea_len)
    atom_fea = jax.random.normal(k_a, (N, atom_fea_len), jnp.float32)
    nbr_fea = jax.random.normal(k_n, (N, M, nbr_fea_len), jnp.float32)
    nbr_fea_idx = jax.random.randint(k_i, (N, M), 0, N, jnp.int32)

    # tile_atoms=8 -> 2-step "parallel" grid even at this small demo size.
    out = conv_layer_forward(atom_fea, nbr_fea, nbr_fea_idx, params, tile_atoms=8)
    out = jax.block_until_ready(out)

    ref = _reference_forward(atom_fea, nbr_fea, nbr_fea_idx, params)
    assert out.shape == (N, atom_fea_len)
    max_err = float(jnp.max(jnp.abs(out - ref)))
    assert jnp.allclose(out, ref, atol=5e-4, rtol=5e-4), max_err
    print("KERNEL_OK")
</pallas_src>

<mosaic_0001>
module attributes {stable_mosaic.version = 11 : i64} {
  func.func @pre_kernel(%arg0: memref<16x32xf32, #tpu.memory_space<vmem>>, %arg1: memref<33x128xf32, #tpu.memory_space<vmem>>, %arg2: memref<16x64xf32, #tpu.memory_space<vmem>>, %arg3: memref<16x64xf32, #tpu.memory_space<vmem>>) attributes {dimension_semantics = [], scalar_prefetch = 0 : i64, scratch_operands = 0 : i64, tpu.core_type = #tpu.core_type<tc>} {
    %c0 = arith.constant 0 : index
    %c0_0 = arith.constant 0 : index
    %0 = vector.load %arg0[%c0, %c0_0] : memref<16x32xf32, #tpu.memory_space<vmem>>, vector<16x32xf32>
    %c0_1 = arith.constant 0 : index
    %c0_2 = arith.constant 0 : index
    %1 = vector.load %arg1[%c0_1, %c0_2] : memref<33x128xf32, #tpu.memory_space<vmem>>, vector<32x128xf32>
    %cst = arith.constant dense<0.000000e+00> : vector<16x128xf32>
    %2 = tpu.matmul %0, %1, %cst {dimension_numbers = #tpu.dot_dimension_numbers<[1], [0], [0], [1], [0, 0, 1, 1], [], []>} : vector<16x32xf32>, vector<32x128xf32>, vector<16x128xf32> -> vector<16x128xf32>
    %c32 = arith.constant 32 : index
    %c0_3 = arith.constant 0 : index
    %3 = vector.load %arg1[%c32, %c0_3] : memref<33x128xf32, #tpu.memory_space<vmem>>, vector<1x128xf32>
    %4 = vector.broadcast %3 : vector<1x128xf32> to vector<16x128xf32>
    %5 = arith.addf %2, %4 : vector<16x128xf32>
    %6 = vector.extract_strided_slice %5 {offsets = [0, 0], sizes = [16, 64], strides = [1, 1]} : vector<16x128xf32> to vector<16x64xf32>
    %c0_4 = arith.constant 0 : index
    %c0_5 = arith.constant 0 : index
    %7 = vector.load %arg2[%c0_4, %c0_5] : memref<16x64xf32, #tpu.memory_space<vmem>>, vector<16x64xf32>
    tpu.vector_store %arg2[%c0_4, %c0_5], %6 {strides = array<i32>} : memref<16x64xf32, #tpu.memory_space<vmem>>, vector<16x64xf32>,
    %8 = vector.extract_strided_slice %5 {offsets = [0, 64], sizes = [16, 64], strides = [1, 1]} : vector<16x128xf32> to vector<16x64xf32>
    %c0_6 = arith.constant 0 : index
    %c0_7 = arith.constant 0 : index
    %9 = vector.load %arg3[%c0_6, %c0_7] : memref<16x64xf32, #tpu.memory_space<vmem>>, vector<16x64xf32>
    tpu.vector_store %arg3[%c0_6, %c0_7], %8 {strides = array<i32>} : memref<16x64xf32, #tpu.memory_space<vmem>>, vector<16x64xf32>,
    return
  }
}

</mosaic_0001>

<llo_original>
// kernel: tpu_custom_call.1
$region0: #{tpu_custom_call.1}
  #allocation0 [shape = 'u32[]', space=smem, size = 0x4, offset = 0x4, fixed_abs, tag = 'smem constant byte address 0x4 - core index']
  #allocation1 [shape = 'u32[144,128]{1,0:T(1,128)}', space=vmem, size = 0x12000, scoped, tag = 'internal scratch']
  %s0 = inlined_call_operand.hbm [shape: f32[16,32], index: 0, kind: input, shape index: {}]
  %s1 = inlined_call_operand.hbm [shape: f32[33,128], index: 1, kind: input, shape index: {}]
  %s2 = inlined_call_operand.hbm [shape: f32[16,64], index: 2, kind: output, shape index: {0}]
  %s3 = inlined_call_operand.hbm [shape: f32[16,64], index: 3, kind: output, shape index: {1}]
  %4 = xla_tuple %s2, %s3
  %s5 = sld [smem:[#allocation0]]
  $region34: #{tpu_custom_call.1} parent=0
    _
  %s7 = ssub.s32 1, %s5
  %s8 = scalar_select 0, %s7, %s5
  $region1: #{tpu_custom_call.1} parent=0
    #allocation2 [shape = 'u8[8192]{0}', space=vmem, size = 0x2000, scoped, tag = 'input window, operand 0, single buffered']
    #allocation3 [shape = 's32[1]{0}', space=sflag, size = 0x4, scoped, tag = 'scoped memory for tpu_custom_call.1']
    #allocation4 [shape = 's32[1]{0}', space=sflag, size = 0x4, scoped, tag = 'scoped memory for tpu_custom_call.1']
    #allocation5 [shape = 'u8[20480]{0}', space=vmem, size = 0x5000, scoped, tag = 'input window, operand 1, single buffered']
    #allocation6 [shape = 's32[1]{0}', space=sflag, size = 0x4, scoped, tag = 'scoped memory for tpu_custom_call.1']
    #allocation7 [shape = 'u8[8192]{0}', space=vmem, size = 0x2000, scoped, tag = 'output window, operand 0, single buffered']
    #allocation8 [shape = 'u8[8192]{0}', space=vmem, size = 0x2000, scoped, tag = 'output window, operand 1, single buffered']
    #allocation9 [shape = 's32[1]{0}', space=sflag, size = 0x4, scoped, tag = 'scoped memory for tpu_custom_call.1']
    %9 = vsyncpa [#allocation3], 0
    %10 = vsyncpa [#allocation6], 0
    %11 = vsyncpa [#allocation4], 0
    %12 = vsyncpa [#allocation9], 0
    // Predicated region
    $region2: #{tpu_custom_call.1} parent=1 // pred_check
      _
    $region3: #{tpu_custom_call.1} parent=1 // pred_check_branch
      %14 = sbr.rel (0) target = $region5
    $region4: #{tpu_custom_call.1} parent=1 // pred_region
      %s16 = ssub.s32 256, 256
      %17 = vsyncadd [#allocation3], %s16
      %s18 = sshll.u32 [#allocation2], 4
      %s19 = int_to_ptr.vmem [resolvable:$true] %s18
      %24 = dma.hbm_to_vmem [thread:$0]  %s0, 256, %s19, [#allocation3], 128, 128, 8
    $region5: #{tpu_custom_call.1} parent=1 // pred_fallthru
      _
    // Predicated region
    $region6: #{tpu_custom_call.1} parent=1 // pred_check
      _
    $region7: #{tpu_custom_call.1} parent=1 // pred_check_branch
      %26 = sbr.rel (0) target = $region9
    $region8: #{tpu_custom_call.1} parent=1 // pred_region
      %s28 = ssub.s32 640, 640
      %29 = vsyncadd [#allocation6], %s28
      %s30 = sshll.u32 [#allocation5], 4
      %s31 = int_to_ptr.vmem [resolvable:$true] %s30
      %36 = dma.hbm_to_vmem [thread:$0]  %s1, 640, %s31, [#allocation6], 128, 128, 8
    $region9: #{tpu_custom_call.1} parent=1 // pred_fallthru
      _
    // Predicated region
    $region10: #{tpu_custom_call.1} parent=1 // pred_check
      _
    $region11: #{tpu_custom_call.1} parent=1 // pred_check_branch
      %38 = sbr.rel (0) target = $region13
    $region12: #{tpu_custom_call.1} parent=1 // pred_region
      %39 = dma.done [#allocation3], 256
    $region13: #{tpu_custom_call.1} parent=1 // pred_fallthru
      _
    // Predicated region
    $region14: #{tpu_custom_call.1} parent=1 // pred_check
      _
    $region15: #{tpu_custom_call.1} parent=1 // pred_check_branch
      %41 = sbr.rel (0) target = $region17
    $region16: #{tpu_custom_call.1} parent=1 // pred_region
      %42 = dma.done [#allocation6], 640
    $region17: #{tpu_custom_call.1} parent=1 // pred_fallthru
      _
    %v43 = vld [vmem:[#allocation2] sm:$0xff]
    %v44 = vld [vmem:[#allocation2 + $0x8] sm:$0xff]
    %v45 = vld [vmem:[#allocation5] sm:$0xff]
    %v46 = vld [vmem:[#allocation5 + $0x8] sm:$0xff]
    %v47 = vld [vmem:[#allocation5 + $0x10] sm:$0xff]
    %v48 = vld [vmem:[#allocation5 + $0x18] sm:$0xff]
    %v49 = vld [vmem:[#allocation5 + $0x20] sm:$0x1]
    %v50 = vlaneseq
    %v51 = vshrl.u32 %v50, 7
    %v52 = vsub.s32 0, %v51
    %v53 = vrot.slane %v49, %v52
    %vm54 = vcmask 261120
    %v56 = vsel %vm54, %v43, 0
    %v59 = vsel %vm54, %v44, 0
    %61 = vmatprep.subr.mxu0 0.0
    %62 = vmatpush1.msra.mxu0 %v45
    %63 = vmatprep.subr.mxu0 0.0
    %64 = vmatpush1.msra.mxu0 %v46
    %65 = vmatprep.subr.mxu0 0.0
    %66 = vmatpush1.msra.mxu0 %v47
    %67 = vmatprep.subr.mxu0 0.0
    %68 = vmatpush1.msra.mxu0 %v48
    %69 = vmatprep.subr.mxu0 0.0
    %70 = vmatpush1.msra.mxu0 0.0
    %71 = vmatprep.subr.mxu0 0.0
    %72 = vmatpush1.msra.mxu0 0.0
    %73 = vmatprep.subr.mxu0 0.0
    %74 = vmatpush1.msra.mxu0 0.0
    %75 = vmatprep.subr.mxu0 0.0
    %76 = vmatpush1.msra.mxu0 0.0
    %77 = vmatprep.subr.mxu0 0.0
    %78 = vmatpush1.msra.mxu0 0.0
    %79 = vmatprep.subr.mxu0 0.0
    %80 = vmatpush1.msra.mxu0 0.0
    %81 = vmatprep.subr.mxu0 0.0
    %82 = vmatpush1.msra.mxu0 0.0
    %83 = vmatprep.subr.mxu0 0.0
    %84 = vmatpush1.msra.mxu0 0.0
    %85 = vmatprep.subr.mxu0 0.0
    %86 = vmatpush1.msra.mxu0 0.0
    %87 = vmatprep.subr.mxu0 0.0
    %88 = vmatpush1.msra.mxu0 0.0
    %89 = vmatprep.subr.mxu0 0.0
    %90 = vmatpush1.msra.mxu0 0.0
    %91 = vmatprep.subr.mxu0 0.0
    %92 = vmatpush1.msra.mxu0 0.0
    %93 = vmatprep.subr.mxu0 0.0
    %94 = vmatpush1.msra.mxu0 0.0
    %95 = vmatprep.subr.mxu0 0.0
    %96 = vmatpush1.msra.mxu0 0.0
    %97 = vmatprep.subr.mxu0 0.0
    %98 = vmatpush1.msra.mxu0 0.0
    %99 = vmatprep.subr.mxu0 0.0
    %100 = vmatpush1.msra.mxu0 0.0
    %101 = vmatprep.subr.mxu0 0.0
    %102 = vmatpush1.msra.mxu0 0.0
    %103 = vmatprep.subr.mxu0 0.0
    %104 = vmatpush1.msra.mxu0 0.0
    %105 = vmatprep.subr.mxu0 0.0
    %106 = vmatpush1.msra.mxu0 0.0
    %107 = vmatprep.subr.mxu0 0.0
    %108 = vmatpush1.msra.mxu0 0.0
    %109 = vmatprep.subr.mxu0 0.0
    %110 = vmatpush1.msra.mxu0 0.0
    %111 = vmatprep.subr.mxu0 0.0
    %112 = vmatpush1.msra.mxu0 0.0
    %113 = vmatprep.subr.mxu0 0.0
    %114 = vmatpush1.msra.mxu0 0.0
    %115 = vmatprep.subr.mxu0 0.0
    %116 = vmatpush1.msra.mxu0 0.0
    %117 = vmatprep.subr.mxu0 0.0
    %118 = vmatpush1.msra.mxu0 0.0
    %119 = vmatprep.subr.mxu0 0.0
    %120 = vmatpush1.msra.mxu0 0.0
    %121 = vmatprep.subr.mxu0 0.0
    %122 = vmatpush1.msra.mxu0 0.0
    %123 = vmatprep.subr.mxu0 0.0
    %124 = vmatpush1.msra.mxu0 0.0
    %125 = vmatprep.mubr.f32.mxu0 0.0
    %126 = vmatmul.mubr.f32.gmra.mrb[0].mxu0 %v56
    %v127 = vpop.f32.mrb[0].mxu0
    %v128 = vadd.f32 %v53, %v127
    %v129 = vpop.f32.mrb[0].mxu0
    %130 = vmatprep.mubr.f32.mxu0 0.0
    %131 = vmatmul.mubr.f32.gmra.mrb[0].mxu0 %v59
    %v132 = vpop.f32.mrb[0].mxu0
    %v133 = vadd.f32 %v53, %v132
    %v134 = vpop.f32.mrb[0].mxu0
    %135 = vdwg.mxu0
    %vm136 = vcmask 523264
    %137 = vst.msk [vmem:[#allocation7] sm:$0xff] %vm136, %v128
    %138 = vst.msk [vmem:[#allocation7 + $0x8] sm:$0xff] %vm136, %v133
    %141 = vrot.lane.b32.xlu0 %v128, 64
    %v142 = vpop.permute.xlu0 %141
    %143 = vrot.lane.b32.xlu0 %v133, 64
    %v144 = vpop.permute.xlu0 %143
    %147 = vst.msk [vmem:[#allocation8] sm:$0xff] %vm136, %v142
    %148 = vst.msk [vmem:[#allocation8 + $0x8] sm:$0xff] %vm136, %v144
    // Predicated region
    $region18: #{tpu_custom_call.1} parent=1 // pred_check
      _
    $region19: #{tpu_custom_call.1} parent=1 // pred_check_branch
      %150 = sbr.rel (0) target = $region21
    $region20: #{tpu_custom_call.1} parent=1 // pred_region
      %s152 = ssub.s32 256, 256
      %153 = vsyncadd [#allocation4], %s152
      %s154 = sshll.u32 [#allocation7], 4
      %s155 = int_to_ptr.vmem [resolvable:$true] %s154
      %160 = dma.vmem_to_hbm [thread:$0]  %s155, 256, %s2, [#allocation4], 128, 128, 8
    $region21: #{tpu_custom_call.1} parent=1 // pred_fallthru
      _
    // Predicated region
    $region22: #{tpu_custom_call.1} parent=1 // pred_check
      _
    $region23: #{tpu_custom_call.1} parent=1 // pred_check_branch
      %162 = sbr.rel (0) target = $region25
    $region24: #{tpu_custom_call.1} parent=1 // pred_region
      %s164 = ssub.s32 256, 256
      %165 = vsyncadd [#allocation9], %s164
      %s166 = sshll.u32 [#allocation8], 4
      %s167 = int_to_ptr.vmem [resolvable:$true] %s166
      %172 = dma.vmem_to_hbm [thread:$0]  %s167, 256, %s3, [#allocation9], 128, 128, 8
    $region25: #{tpu_custom_call.1} parent=1 // pred_fallthru
      _
    // Predicated region
    $region26: #{tpu_custom_call.1} parent=1 // pred_check
      _
    $region27: #{tpu_custom_call.1} parent=1 // pred_check_branch
      %174 = sbr.rel (0) target = $region29
    $region28: #{tpu_custom_call.1} parent=1 // pred_region
      %175 = dma.done [#allocation4], 256
    $region29: #{tpu_custom_call.1} parent=1 // pred_fallthru
      _
    // Predicated region
    $region30: #{tpu_custom_call.1} parent=1 // pred_check
      _
    $region31: #{tpu_custom_call.1} parent=1 // pred_check_branch
      %177 = sbr.rel (0) target = $region33
    $region32: #{tpu_custom_call.1} parent=1 // pred_region
      %178 = dma.done [#allocation9], 256
    $region33: #{tpu_custom_call.1} parent=1 // pred_fallthru
      _
    %179 = vsyncpa [#allocation3], 1
    %180 = vsyncpa [#allocation6], 1
    %181 = vsyncpa [#allocation4], 1
    %182 = vsyncpa [#allocation9], 1

</llo_original>
